<compile_context>
chip_gen: v7x
topology: tpu7x:2x2x1
jax: 0.10.0
libtpu: 0.0.40
codegen_flags: <defaults>
</compile_context>

<pallas_src>
import math

import jax
import jax.numpy as jnp
from jax.experimental import pallas as pl
from jax.experimental.pallas import tpu as pltpu

_LANES = 128
_SUBLANES = 8
_LOG_2PI = math.log(2.0 * math.pi)


# ---------------------------------------------------------------------------
# Kernels: consume (bm, 128) tiles, accumulate into a resident (8, 128) f32
# accumulator block (one per core-shard along the leading "parallel" axis).
# ---------------------------------------------------------------------------
def _gaussian_ll_kernel(x_ref, mean_ref, logvar_ref, acc_ref):
    @pl.when(pl.program_id(1) == 0)
    def _init():
        acc_ref[...] = jnp.zeros_like(acc_ref)

    x = x_ref[...].astype(jnp.float32)
    mu = mean_ref[...].astype(jnp.float32)
    lv = logvar_ref[...].astype(jnp.float32)
    d = x - mu
    # logvar + (x - mean)^2 * exp(-logvar)   (log(2*pi) constant added outside)
    term = lv + d * d * jnp.exp(-lv)
    acc_ref[...] += term.reshape(-1, _SUBLANES, _LANES).sum(axis=0)


def _make_pointwise_kernel(mse):
    def kernel(x_ref, mean_ref, acc_ref):
        @pl.when(pl.program_id(1) == 0)
        def _init():
            acc_ref[...] = jnp.zeros_like(acc_ref)

        x = x_ref[...].astype(jnp.float32)
        mu = mean_ref[...].astype(jnp.float32)
        d = x - mu
        v = -(d * d) if mse else -jnp.abs(d)
        # torch.nan_to_num(v, posinf=10, neginf=-10):
        #   +inf can never occur for -(d^2) / -|d|, so only NaN->0 and -inf->-10.
        v = jnp.where(v != v, 0.0, v)
        v = jnp.where(v == -jnp.inf, -10.0, v)
        acc_ref[...] += v.reshape(-1, _SUBLANES, _LANES).sum(axis=0)

    return kernel


_mse_kernel = _make_pointwise_kernel(mse=True)
_l1_kernel = _make_pointwise_kernel(mse=False)


# ---------------------------------------------------------------------------
# Pure-jnp tail reducers (small ragged remainder / sub-vreg inputs).
# ---------------------------------------------------------------------------
def _gaussian_tail(x, mu, lv):
    d = x.astype(jnp.float32) - mu.astype(jnp.float32)
    lv = lv.astype(jnp.float32)
    return jnp.sum(lv + d * d * jnp.exp(-lv))


def _make_pointwise_tail(mse):
    def tail(x, mu):
        d = x.astype(jnp.float32) - mu.astype(jnp.float32)
        v = -(d * d) if mse else -jnp.abs(d)
        v = jnp.where(jnp.isnan(v), 0.0, v)
        v = jnp.where(v == -jnp.inf, -10.0, v)
        return jnp.sum(v)

    return tail


_mse_tail = _make_pointwise_tail(mse=True)
_l1_tail = _make_pointwise_tail(mse=False)


# ---------------------------------------------------------------------------
# Wrapper: flatten -> tile-aligned lane-dense slab -> pipelined reduction
# kernel (+ tiny jnp tail for the unaligned remainder).
# ---------------------------------------------------------------------------
def _tiled_sum(kernel, tail_fn, arrays, block_rows, flops_per_elem, trans_per_elem):
    n = int(arrays[0].size)
    itemsize = min(jnp.dtype(a.dtype).itemsize for a in arrays)
    # Sub-32-bit dtypes pack along sublanes: 8 (f32) / 16 (bf16) / 32 (int8, fp8).
    sub = _SUBLANES * max(1, 4 // int(itemsize))

    flats = [a.reshape(-1) for a in arrays]      # bitcast reshape, no copy

    rows = n // _LANES
    if rows < sub:
        # Smaller than one vreg tile: reduce entirely with jnp.
        return tail_fn(*flats)

    # Leading "parallel" axis of size 2: sharded across the 2 TensorCores on
    # v7x, harmless serial halves on 1-TC v5e/v6e.
    split = 2 if rows >= 2 * sub else 1
    g_inner = max(1, -(-rows // (split * block_rows)))        # ceil
    bm = (rows // (split * g_inner) // sub) * sub             # rows/block <= block_rows
    if bm == 0:
        return tail_fn(*flats)
    m_k = bm * split * g_inner                                # rows handled by kernel
    n_k = m_k * _LANES

    # Tile-aligned prefix -> (m_k, 128) slab.  When n_k == n this is a pure
    # bitcast reshape (no extra HBM traffic); otherwise only the prefix is
    # sliced and the small remainder goes through the jnp tail below.
    if n_k == n:
        slabs = [f.reshape(m_k, _LANES) for f in flats]
    else:
        slabs = [f[:n_k].reshape(m_k, _LANES) for f in flats]

    cost = pl.CostEstimate(
        flops=flops_per_elem * n_k,
        transcendentals=trans_per_elem * n_k,
        bytes_accessed=sum(n_k * jnp.dtype(s.dtype).itemsize for s in slabs)
        + 4 * split * _SUBLANES * _LANES,
    )

    params = dict(dimension_semantics=("parallel", "arbitrary"))
    # Double-buffered input working set; if it exceeds v5e's 16 MiB default
    # scoped VMEM, raise the limit explicitly (kept well under v7x's 64 MiB
    # physical VMEM).
    max_item = max(jnp.dtype(a.dtype).itemsize for a in arrays)
    work_bytes = len(slabs) * 2 * bm * _LANES * int(max_item) + (64 << 10)
    if work_bytes > (12 << 20):
        params["vmem_limit_bytes"] = min(2 * work_bytes, 48 << 20)

    in_map = lambda c, i: (c * g_inner + i, 0)
    lane_sums = pl.pallas_call(
        kernel,
        out_shape=jax.ShapeDtypeStruct((split * _SUBLANES, _LANES), jnp.float32),
        grid=(split, g_inner),
        in_specs=[pl.BlockSpec((bm, _LANES), in_map)] * len(slabs),
        out_specs=pl.BlockSpec((_SUBLANES, _LANES), lambda c, i: (c, 0)),
        compiler_params=pltpu.CompilerParams(**params),
        cost_estimate=cost,
    )(*slabs)

    total = jnp.sum(lane_sums)                   # final tiny (split*8, 128) reduce
    if n_k != n:
        total = total + tail_fn(*(f[n_k:] for f in flats))
    return total


def log_likelihood_gaussian(x, mean, logvar=None, *, mse=True, block_rows=2048):
    """Forward of LogLikelihoodGaussian. Returns a scalar (float32)."""
    batch = x.shape[0]
    if logvar is not None:
        total = _tiled_sum(_gaussian_ll_kernel, _gaussian_tail, (x, mean, logvar),
                           block_rows, flops_per_elem=5, trans_per_elem=1)
        n_per_batch = x.size // batch
        return -0.5 * (_LOG_2PI * n_per_batch + total / batch)
    kernel = _mse_kernel if mse else _l1_kernel
    tail = _mse_tail if mse else _l1_tail
    total = _tiled_sum(kernel, tail, (x, mean),
                       block_rows, flops_per_elem=4, trans_per_elem=0)
    return total / batch


# ---------------------------------------------------------------------------
# Pure-JAX reference (mirrors the PyTorch module exactly).
# ---------------------------------------------------------------------------
def reference(x, mean, logvar=None, mse=True):
    if logvar is not None:
        term = _LOG_2PI + logvar + (x - mean) ** 2 / jnp.exp(logvar)
        return -0.5 * jnp.sum(jnp.mean(term, axis=0))
    v = -((x - mean) ** 2) if mse else -jnp.abs(x - mean)
    v = jnp.nan_to_num(v, posinf=10.0, neginf=-10.0)
    return jnp.sum(v) / x.shape[0]


if __name__ == "__main__":
    key = jax.random.PRNGKey(0)
    kx, km, kl = jax.random.split(key, 3)

    # Small shapes consistent with the module (batch, seq, channels).
    B, T, C = 16, 100, 65
    x = jax.random.normal(kx, (B, T, C), dtype=jnp.float32)
    mean = jax.random.normal(km, (B, T, C), dtype=jnp.float32)
    logvar = 0.5 * jax.random.normal(kl, (B, T, C), dtype=jnp.float32)

    # Path 1: Gaussian log-likelihood (logvar given).
    out_g = jax.block_until_ready(log_likelihood_gaussian(x, mean, logvar))
    ref_g = reference(x, mean, logvar)
    assert out_g.shape == (), out_g.shape
    assert jnp.allclose(out_g, ref_g, rtol=5e-4, atol=1e-2), (out_g, ref_g)

    # Path 2: logvar=None, mse=True (module default).
    out_m = jax.block_until_ready(log_likelihood_gaussian(x, mean))
    ref_m = reference(x, mean)
    assert jnp.allclose(out_m, ref_m, rtol=5e-4, atol=1e-2), (out_m, ref_m)

    # Path 3: logvar=None, mse=False (L1 variant).
    out_l = jax.block_until_ready(log_likelihood_gaussian(x, mean, mse=False))
    ref_l = reference(x, mean, mse=False)
    assert jnp.allclose(out_l, ref_l, rtol=5e-4, atol=1e-2), (out_l, ref_l)

    print("KERNEL_OK")
</pallas_src>

<mosaic_0001>
module attributes {stable_mosaic.version = 11 : i64} {
  func.func @_gaussian_ll_kernel(%arg0: i32, %arg1: i32, %arg2: memref<400x128xf32, #tpu.memory_space<vmem>>, %arg3: memref<400x128xf32, #tpu.memory_space<vmem>>, %arg4: memref<400x128xf32, #tpu.memory_space<vmem>>, %arg5: memref<8x128xf32, #tpu.memory_space<vmem>>) attributes {dimension_semantics = [#tpu.dimension_semantics<parallel>, #tpu.dimension_semantics<arbitrary>], iteration_bounds = array<i64: 2, 1>, scalar_prefetch = 0 : i64, scratch_operands = 0 : i64, tpu.core_type = #tpu.core_type<tc>, window_params = [{transform_indices = @transform_0, window_bounds = array<i64: 400, 128>}, {transform_indices = @transform_1, window_bounds = array<i64: 400, 128>}, {transform_indices = @transform_2, window_bounds = array<i64: 400, 128>}, {transform_indices = @transform_3, window_bounds = array<i64: 8, 128>}]} {
    %c0_i32 = arith.constant 0 : i32
    %0 = arith.cmpi eq, %arg1, %c0_i32 : i32
    %1 = arith.extui %0 : i1 to i32
    %c0_i32_0 = arith.constant 0 : i32
    %2 = arith.cmpi ne, %1, %c0_i32_0 : i32
    scf.if %2 {
      %cst_11 = arith.constant 0.000000e+00 : f32
      %18 = vector.broadcast %cst_11 : f32 to vector<8x128xf32>
      %c0_12 = arith.constant 0 : index
      %c0_13 = arith.constant 0 : index
      %19 = vector.load %arg5[%c0_12, %c0_13] : memref<8x128xf32, #tpu.memory_space<vmem>>, vector<8x128xf32>
      tpu.vector_store %arg5[%c0_12, %c0_13], %18 {strides = array<i32>} : memref<8x128xf32, #tpu.memory_space<vmem>>, vector<8x128xf32>,
    } else {
    }
    %c0 = arith.constant 0 : index
    %c0_1 = arith.constant 0 : index
    %3 = vector.load %arg2[%c0, %c0_1] : memref<400x128xf32, #tpu.memory_space<vmem>>, vector<400x128xf32>
    %c0_2 = arith.constant 0 : index
    %c0_3 = arith.constant 0 : index
    %4 = vector.load %arg3[%c0_2, %c0_3] : memref<400x128xf32, #tpu.memory_space<vmem>>, vector<400x128xf32>
    %c0_4 = arith.constant 0 : index
    %c0_5 = arith.constant 0 : index
    %5 = vector.load %arg4[%c0_4, %c0_5] : memref<400x128xf32, #tpu.memory_space<vmem>>, vector<400x128xf32>
    %6 = arith.subf %3, %4 : vector<400x128xf32>
    %7 = arith.mulf %6, %6 : vector<400x128xf32>
    %cst = arith.constant 0.000000e+00 : f32
    %8 = vector.broadcast %cst : f32 to vector<400x128xf32>
    %9 = arith.subf %8, %5 : vector<400x128xf32>
    %10 = math.exp %9 : vector<400x128xf32>
    %11 = arith.mulf %7, %10 : vector<400x128xf32>
    %12 = arith.addf %5, %11 : vector<400x128xf32>
    %c0_6 = arith.constant 0 : index
    %c0_7 = arith.constant 0 : index
    %13 = vector.load %arg5[%c0_6, %c0_7] : memref<8x128xf32, #tpu.memory_space<vmem>>, vector<8x128xf32>
    %14 = vector.shape_cast %12 : vector<400x128xf32> to vector<50x8x128xf32>
    %cst_8 = arith.constant dense<0.000000e+00> : vector<8x128xf32>
    %15 = vector.multi_reduction <add>, %14, %cst_8 [0] : vector<50x8x128xf32> to vector<8x128xf32>
    %16 = arith.addf %13, %15 : vector<8x128xf32>
    %c0_9 = arith.constant 0 : index
    %c0_10 = arith.constant 0 : index
    %17 = vector.load %arg5[%c0_9, %c0_10] : memref<8x128xf32, #tpu.memory_space<vmem>>, vector<8x128xf32>
    tpu.vector_store %arg5[%c0_9, %c0_10], %16 {strides = array<i32>} : memref<8x128xf32, #tpu.memory_space<vmem>>, vector<8x128xf32>,
    return
  }
  func.func @transform_0(%arg0: i32, %arg1: i32) -> (i32, i32) {
    %c1_i32 = arith.constant 1 : i32
    %0 = arith.muli %arg0, %c1_i32 : i32
    %1 = arith.addi %0, %arg1 : i32
    %c0_i32 = arith.constant 0 : i32
    %c0_i32_0 = arith.constant 0 : i32
    return %1, %c0_i32 : i32, i32
  }
  func.func @transform_1(%arg0: i32, %arg1: i32) -> (i32, i32) {
    %c1_i32 = arith.constant 1 : i32
    %0 = arith.muli %arg0, %c1_i32 : i32
    %1 = arith.addi %0, %arg1 : i32
    %c0_i32 = arith.constant 0 : i32
    %c0_i32_0 = arith.constant 0 : i32
    return %1, %c0_i32 : i32, i32
  }
  func.func @transform_2(%arg0: i32, %arg1: i32) -> (i32, i32) {
    %c1_i32 = arith.constant 1 : i32
    %0 = arith.muli %arg0, %c1_i32 : i32
    %1 = arith.addi %0, %arg1 : i32
    %c0_i32 = arith.constant 0 : i32
    %c0_i32_0 = arith.constant 0 : i32
    return %1, %c0_i32 : i32, i32
  }
  func.func @transform_3(%arg0: i32, %arg1: i32) -> (i32, i32) {
    %c0_i32 = arith.constant 0 : i32
    %c0_i32_0 = arith.constant 0 : i32
    return %arg0, %c0_i32 : i32, i32
  }
}

</mosaic_0001>

<llo_original>
// kernel: tpu_custom_call.1
$region0: #{tpu_custom_call.1}
  #allocation0 [shape = 'u32[]', space=smem, size = 0x4, offset = 0x4, fixed_abs, tag = 'smem constant byte address 0x4 - core index']
  #allocation1 [shape = 'u32[144,128]{1,0:T(1,128)}', space=vmem, size = 0x12000, scoped, tag = 'internal scratch']
  %s0 = inlined_call_operand.hbm [shape: f32[800,128], index: 0, kind: input, shape index: {}]
  %s1 = inlined_call_operand.hbm [shape: f32[800,128], index: 1, kind: input, shape index: {}]
  %s2 = inlined_call_operand.hbm [shape: f32[800,128], index: 2, kind: input, shape index: {}]
  %s3 = inlined_call_operand.hbm [shape: f32[16,128], index: 3, kind: output, shape index: {}]
  %s4 = sld [smem:[#allocation0]]
  $region61: #{tpu_custom_call.1} parent=0
    _
  %s6 = ssub.s32 1, %s4
  %s7 = scalar_select 0, %s6, %s4
  $region1: #{tpu_custom_call.1} parent=0
    #allocation2 [shape = 'u8[409600]{0}', space=vmem, size = 0x64000, scoped, tag = 'input window, operand 0']
    #allocation3 [shape = 's32[2]{0}', space=sflag, size = 0x8, scoped, tag = 'scoped memory for tpu_custom_call.1']
    #allocation4 [shape = 's32[2]{0}', space=sflag, size = 0x8, scoped, tag = 'scoped memory for tpu_custom_call.1']
    #allocation5 [shape = 'u8[409600]{0}', space=vmem, size = 0x64000, scoped, tag = 'input window, operand 1']
    #allocation6 [shape = 's32[2]{0}', space=sflag, size = 0x8, scoped, tag = 'scoped memory for tpu_custom_call.1']
    #allocation7 [shape = 'u8[409600]{0}', space=vmem, size = 0x64000, scoped, tag = 'input window, operand 2']
    #allocation8 [shape = 'u8[8192]{0}', space=vmem, size = 0x2000, scoped, tag = 'output window, operand 0']
    %8 = vsyncpa [#allocation3], 0
    %s9 = scalar_lea.sflag [#allocation3], 1
    %10 = vsyncpa %s9, 0
    %11 = vsyncpa [#allocation6], 0
    %s12 = scalar_lea.sflag [#allocation6], 1
    %13 = vsyncpa %s12, 0
    %14 = vsyncpa [#allocation4], 0
    %s15 = scalar_lea.sflag [#allocation4], 1
    %16 = vsyncpa %s15, 0
    loop: start=0, step=1, limit=4
    $region2: #{tpu_custom_call.1} parent=1 // loop_pre_header
      _
    $region3: #{tpu_custom_call.1} parent=1 // loop_header
      %s18 = sphi 0, %s22
      %p19 = scmp.ge.s32.totalorder %s18, 4
      %s25 = sphi 0, %s37
      %s26 = sphi 0, %s33
      %s27 = sphi 0, %s25
      %s28 = sphi 0, %s26
      %s29 = sphi 0, %s27
      %s30 = sphi 0, %s28
      %s42 = sphi 0, %s44
      %s45 = sphi 0, %s42
      %s46 = sphi 0, %s45
      %s62 = sphi 0, %s46
      %s70 = sphi 0, %s72
      %s73 = sphi 0, %s70
      %s74 = sphi 0, %s73
      %s90 = sphi 0, %s74
      %s98 = sphi 0, %s100
      %s101 = sphi 0, %s98
      %s102 = sphi 0, %s101
      %s118 = sphi 0, %s102
      %s124 = sphi 0, %s126
      %s127 = sphi 0, %s124
      %s128 = sphi 0, %s127
      %s144 = sphi 0, %s128
    $region4: #{tpu_custom_call.1} parent=1 // loop_header_branch
      %21 = sbr.rel (%p19) target = $region8
    $region5: #{tpu_custom_call.1} parent=1 // loop_body
      %s23 = ssub.s32 %s18, 1
      %s24 = ssub.s32 %s18, 2
      %s31 = sadd.s32 1, %s26
      %p32 = scmp.ge.s32.totalorder %s31, 1
      %s33 = scalar_select %p32, 0, %s31
      %s34 = sadd.s32 1, %s25
      %s35 = scalar_select %p32, %s34, %s25
      %p36 = scmp.ge.s32.totalorder %s35, 2
      %s37 = scalar_select %p36, 0, %s35
      %s38 = sadd.s32 %s25, %s26
      %s39 = sadd.s32 %s37, %s33
      %s40 = ssub.s32 %s38, %s39
      %p41 = scmp.eq.s32.totalorder %s40, 0
      %s43 = sadd.s32 %s42, 1
      %s44 = scalar_select %p41, %s42, %s43
      %p47 = pneg %p41
      %p48 = scmp.eq.s32.totalorder %s18, 1
      %p49 = por %p47, %p48
      %p50 = scmp.ne.s32.totalorder %s42, %s45
      %p51 = scmp.eq.s32.totalorder %s18, 0
      %p52 = por %p50, %p51
      %p53 = scmp.ne.s32.totalorder %s42, %s45
      %p54 = scmp.eq.s32.totalorder %s23, 1
      %p55 = por %p53, %p54
      %p56 = scmp.ne.s32.totalorder %s45, %s46
      %p57 = scmp.eq.s32.totalorder %s23, 0
      %p58 = por %p56, %p57
      %p59 = scmp.ne.s32.totalorder %s45, %s46
      %p60 = scmp.eq.s32.totalorder %s24, 1
      %p61 = por %p59, %p60
      %p63 = scmp.ne.s32.totalorder %s46, %s62
      %p64 = scmp.eq.s32.totalorder %s24, 0
      %p65 = por %p63, %p64
      %s66 = sadd.s32 %s25, %s26
      %s67 = sadd.s32 %s37, %s33
      %s68 = ssub.s32 %s66, %s67
      %p69 = scmp.eq.s32.totalorder %s68, 0
      %s71 = sadd.s32 %s70, 1
      %s72 = scalar_select %p69, %s70, %s71
      %p75 = pneg %p69
      %p76 = scmp.eq.s32.totalorder %s18, 1
      %p77 = por %p75, %p76
      %p78 = scmp.ne.s32.totalorder %s70, %s73
      %p79 = scmp.eq.s32.totalorder %s18, 0
      %p80 = por %p78, %p79
      %p81 = scmp.ne.s32.totalorder %s70, %s73
      %p82 = scmp.eq.s32.totalorder %s23, 1
      %p83 = por %p81, %p82
      %p84 = scmp.ne.s32.totalorder %s73, %s74
      %p85 = scmp.eq.s32.totalorder %s23, 0
      %p86 = por %p84, %p85
      %p87 = scmp.ne.s32.totalorder %s73, %s74
      %p88 = scmp.eq.s32.totalorder %s24, 1
      %p89 = por %p87, %p88
      %p91 = scmp.ne.s32.totalorder %s74, %s90
      %p92 = scmp.eq.s32.totalorder %s24, 0
      %p93 = por %p91, %p92
      %s94 = sadd.s32 %s25, %s26
      %s95 = sadd.s32 %s37, %s33
      %s96 = ssub.s32 %s94, %s95
      %p97 = scmp.eq.s32.totalorder %s96, 0
      %s99 = sadd.s32 %s98, 1
      %s100 = scalar_select %p97, %s98, %s99
      %p103 = pneg %p97
      %p104 = scmp.eq.s32.totalorder %s18, 1
      %p105 = por %p103, %p104
      %p106 = scmp.ne.s32.totalorder %s98, %s101
      %p107 = scmp.eq.s32.totalorder %s18, 0
      %p108 = por %p106, %p107
      %p109 = scmp.ne.s32.totalorder %s98, %s101
      %p110 = scmp.eq.s32.totalorder %s23, 1
      %p111 = por %p109, %p110
      %p112 = scmp.ne.s32.totalorder %s101, %s102
      %p113 = scmp.eq.s32.totalorder %s23, 0
      %p114 = por %p112, %p113
      %p115 = scmp.ne.s32.totalorder %s101, %s102
      %p116 = scmp.eq.s32.totalorder %s24, 1
      %p117 = por %p115, %p116
      %p119 = scmp.ne.s32.totalorder %s102, %s118
      %p120 = scmp.eq.s32.totalorder %s24, 0
      %p121 = por %p119, %p120
      %s122 = ssub.s32 %s25, %s37
      %p123 = scmp.eq.s32.totalorder %s122, 0
      %s125 = sadd.s32 %s124, 1
      %s126 = scalar_select %p123, %s124, %s125
      %p129 = pneg %p123
      %p130 = scmp.eq.s32.totalorder %s18, 1
      %p131 = por %p129, %p130
      %p132 = scmp.ne.s32.totalorder %s124, %s127
      %p133 = scmp.eq.s32.totalorder %s18, 0
      %p134 = por %p132, %p133
      %p135 = scmp.ne.s32.totalorder %s124, %s127
      %p136 = scmp.eq.s32.totalorder %s23, 1
      %p137 = por %p135, %p136
      %p138 = scmp.ne.s32.totalorder %s127, %s128
      %p139 = scmp.eq.s32.totalorder %s23, 0
      %p140 = por %p138, %p139
      %p141 = scmp.ne.s32.totalorder %s127, %s128
      %p142 = scmp.eq.s32.totalorder %s24, 1
      %p143 = por %p141, %p142
      %p145 = scmp.ne.s32.totalorder %s128, %s144
      %p146 = scmp.eq.s32.totalorder %s24, 0
      %p147 = por %p145, %p146
      %p148 = scmp.le.s32.totalorder 1, %s18
      %p149 = scmp.lt.s32.totalorder %s18, 3
      %p150 = pnand %p148, %p149
      %p151 = pneg %p150
      // Predicated region
      $region9: #{tpu_custom_call.1} parent=5 // pred_check
        _
      $region10: #{tpu_custom_call.1} parent=5 // pred_check_branch
        %153 = sbr.rel (%p150) target = $region12
      $region11: #{tpu_custom_call.1} parent=5 // pred_region
        %s154 = ssub.s32 %s18, 1
      $region12: #{tpu_custom_call.1} parent=5 // pred_fallthru
        _
      %p155 = scmp.lt.s32.totalorder %s18, 2
      // Predicated region
      $region13: #{tpu_custom_call.1} parent=5 // pred_check
        %p156 = pneg %p155
      $region14: #{tpu_custom_call.1} parent=5 // pred_check_branch
        %158 = sbr.rel (%p156) target = $region16
      $region15: #{tpu_custom_call.1} parent=5 // pred_region
        // Predicated region
        $region17: #{tpu_custom_call.1} parent=15 // pred_check
          %p159 = pneg %p52
        $region18: #{tpu_custom_call.1} parent=15 // pred_check_branch
          %161 = sbr.rel (%p159) target = $region20
        $region19: #{tpu_custom_call.1} parent=15 // pred_region
          %s162 = sand.u32 %s42, 1
          %s163 = scalar_lea.sflag [#allocation3], %s162
          %s164 = sand.u32 %s42, 1
          %s165 = smul.addr %s164, 400
          %s166 = scalar_lea.vmem [#allocation2], %s165
          %s167 = sadd.s32 %s25, %s26
          %s168 = smul.u32 50, %s167
          %s170 = ssub.s32 6400, 6400
          %171 = vsyncadd %s163, %s170
          %s172 = smul.addr %s168, 128
          %s173 = scalar_lea.hbm %s0, %s172
          %s174 = sshll.u32 %s166, 4
          %s175 = int_to_ptr.vmem [resolvable:$true] %s174
          %180 = dma.hbm_to_vmem [thread:$0]  %s173, 6400, %s175, %s163, 128, 128, 8
        $region20: #{tpu_custom_call.1} parent=15 // pred_fallthru
          _
        // Predicated region
        $region21: #{tpu_custom_call.1} parent=15 // pred_check
          %p181 = pneg %p80
        $region22: #{tpu_custom_call.1} parent=15 // pred_check_branch
          %183 = sbr.rel (%p181) target = $region24
        $region23: #{tpu_custom_call.1} parent=15 // pred_region
          %s184 = sand.u32 %s18, 1
          %s185 = scalar_lea.sflag [#allocation6], %s184
          %s186 = sand.u32 %s70, 1
          %s187 = smul.addr %s186, 400
          %s188 = scalar_lea.vmem [#allocation5], %s187
          %s189 = sadd.s32 %s25, %s26
          %s190 = smul.u32 50, %s189
          %s192 = ssub.s32 6400, 6400
          %193 = vsyncadd %s185, %s192
          %s194 = smul.addr %s190, 128
          %s195 = scalar_lea.hbm %s1, %s194
          %s196 = sshll.u32 %s188, 4
          %s197 = int_to_ptr.vmem [resolvable:$true] %s196
          %202 = dma.hbm_to_vmem [thread:$0]  %s195, 6400, %s197, %s185, 128, 128, 8
        $region24: #{tpu_custom_call.1} parent=15 // pred_fallthru
          _
        // Predicated region
        $region25: #{tpu_custom_call.1} parent=15 // pred_check
          %p203 = pneg %p108
        $region26: #{tpu_custom_call.1} parent=15 // pred_check_branch
          %205 = sbr.rel (%p203) target = $region28
        $region27: #{tpu_custom_call.1} parent=15 // pred_region
          %s206 = sand.u32 %s18, 1
          %s207 = scalar_lea.sflag [#allocation6], %s206
          %s208 = sand.u32 %s98, 1
          %s209 = smul.addr %s208, 400
          %s210 = scalar_lea.vmem [#allocation7], %s209
          %s211 = sadd.s32 %s25, %s26
          %s212 = smul.u32 50, %s211
          %s214 = ssub.s32 6400, 6400
          %215 = vsyncadd %s207, %s214
          %s216 = smul.addr %s212, 128
          %s217 = scalar_lea.hbm %s2, %s216
          %s218 = sshll.u32 %s210, 4
          %s219 = int_to_ptr.vmem [resolvable:$true] %s218
          %224 = dma.hbm_to_vmem [thread:$0]  %s217, 6400, %s219, %s207, 128, 128, 8
        $region28: #{tpu_custom_call.1} parent=15 // pred_fallthru
          _
      $region16: #{tpu_custom_call.1} parent=5 // pred_fallthru
        _
      %p225 = scmp.le.s32.totalorder 1, %s18
      %p226 = scmp.lt.s32.totalorder %s18, 3
      %p227 = pnand %p225, %p226
      %p228 = pneg %p227
      // Predicated region
      $region29: #{tpu_custom_call.1} parent=5 // pred_check
        _
      $region30: #{tpu_custom_call.1} parent=5 // pred_check_branch
        %230 = sbr.rel (%p227) target = $region32
      $region31: #{tpu_custom_call.1} parent=5 // pred_region
        %s231 = ssub.s32 %s18, 1
        %s232 = sand.u32 %s45, 1
        %s233 = scalar_lea.sflag [#allocation3], %s232
        %s234 = sand.u32 %s45, 1
        %s235 = smul.addr %s234, 400
        %s236 = scalar_lea.vmem [#allocation2], %s235
        // Predicated region
        $region33: #{tpu_custom_call.1} parent=31 // pred_check
          %p237 = pneg %p58
        $region34: #{tpu_custom_call.1} parent=31 // pred_check_branch
          %239 = sbr.rel (%p237) target = $region36
        $region35: #{tpu_custom_call.1} parent=31 // pred_region
          %240 = dma.done %s233, 6400
        $region36: #{tpu_custom_call.1} parent=31 // pred_fallthru
          _
        %s241 = sand.u32 %s23, 1
        %s242 = scalar_lea.sflag [#allocation6], %s241
        %s243 = sand.u32 %s73, 1
        %s244 = smul.addr %s243, 400
        %s245 = scalar_lea.vmem [#allocation5], %s244
        // Predicated region
        $region37: #{tpu_custom_call.1} parent=31 // pred_check
          %p246 = pneg %p86
        $region38: #{tpu_custom_call.1} parent=31 // pred_check_branch
          %248 = sbr.rel (%p246) target = $region40
        $region39: #{tpu_custom_call.1} parent=31 // pred_region
          %249 = dma.done %s242, 6400
        $region40: #{tpu_custom_call.1} parent=31 // pred_fallthru
          _
        %s250 = sand.u32 %s23, 1
        %s251 = scalar_lea.sflag [#allocation6], %s250
        %s252 = sand.u32 %s101, 1
        %s253 = smul.addr %s252, 400
        %s254 = scalar_lea.vmem [#allocation7], %s253
        // Predicated region
        $region41: #{tpu_custom_call.1} parent=31 // pred_check
          %p255 = pneg %p114
        $region42: #{tpu_custom_call.1} parent=31 // pred_check_branch
          %257 = sbr.rel (%p255) target = $region44
        $region43: #{tpu_custom_call.1} parent=31 // pred_region
          %258 = dma.done %s251, 6400
        $region44: #{tpu_custom_call.1} parent=31 // pred_fallthru
          _
        %s259 = sand.u32 %s45, 1
        %s260 = scalar_lea.sflag [#allocation3], %s259
        %s261 = sand.u32 %s45, 1
        %s262 = smul.addr %s261, 400
        %s263 = scalar_lea.vmem [#allocation2], %s262
        %p264 = pneg %p58
        %p265 = pneg %p55
        %s266 = sand.u32 %s23, 1
        %s267 = scalar_lea.sflag [#allocation6], %s266
        %s268 = sand.u32 %s73, 1
        %s269 = smul.addr %s268, 400
        %s270 = scalar_lea.vmem [#allocation5], %s269
        %p271 = pneg %p86
        %p272 = pneg %p83
        %s273 = sand.u32 %s23, 1
        %s274 = scalar_lea.sflag [#allocation6], %s273
        %s275 = sand.u32 %s101, 1
        %s276 = smul.addr %s275, 400
        %s277 = scalar_lea.vmem [#allocation7], %s276
        %p278 = pneg %p114
        %p279 = pneg %p111
        %p280 = pneg %p140
        %p281 = pneg %p137
        %s282 = sand.u32 %s127, 1
        %s283 = scalar_lea.sflag [#allocation4], %s282
        %s284 = sand.u32 %s127, 1
        %s285 = smul.addr %s284, 8
        %s286 = scalar_lea.vmem [#allocation8], %s285
        %s287 = sadd.s32 %s27, %s28
        %s288 = smul.u32 50, %s287
        %s289 = sadd.s32 %s27, %s28
        %s290 = smul.u32 50, %s289
        %s291 = sadd.s32 %s27, %s28
        %s292 = smul.u32 50, %s291
        %p293 = scmp.eq.s32.totalorder %s28, 0
        // Predicated region
        $region45: #{tpu_custom_call.1} parent=31 // pred_check
          %p294 = pneg %p293
        $region46: #{tpu_custom_call.1} parent=31 // pred_check_branch
          %296 = sbr.rel (%p294) target = $region48
        $region47: #{tpu_custom_call.1} parent=31 // pred_region
          %297 = vst [vmem:[%s286] sm:$0xff] 0.0
        $region48: #{tpu_custom_call.1} parent=31 // pred_fallthru
          _
        %v298 = vld [vmem:[%s236] sm:$0xff]
        %v299 = vld [vmem:[%s236 + $0x8] sm:$0xff]
        %v300 = vld [vmem:[%s236 + $0x10] sm:$0xff]
        %v301 = vld [vmem:[%s236 + $0x18] sm:$0xff]
        %v302 = vld [vmem:[%s236 + $0x20] sm:$0xff]
        %v303 = vld [vmem:[%s236 + $0x28] sm:$0xff]
        %v304 = vld [vmem:[%s236 + $0x30] sm:$0xff]
        %v305 = vld [vmem:[%s236 + $0x38] sm:$0xff]
        %v306 = vld [vmem:[%s236 + $0x40] sm:$0xff]
        %v307 = vld [vmem:[%s236 + $0x48] sm:$0xff]
        %v308 = vld [vmem:[%s236 + $0x50] sm:$0xff]
        %v309 = vld [vmem:[%s236 + $0x58] sm:$0xff]
        %v310 = vld [vmem:[%s236 + $0x60] sm:$0xff]
        %v311 = vld [vmem:[%s236 + $0x68] sm:$0xff]
        %v312 = vld [vmem:[%s236 + $0x70] sm:$0xff]
        %v313 = vld [vmem:[%s236 + $0x78] sm:$0xff]
        %v314 = vld [vmem:[%s236 + $0x80] sm:$0xff]
        %v315 = vld [vmem:[%s236 + $0x88] sm:$0xff]
        %v316 = vld [vmem:[%s236 + $0x90] sm:$0xff]
        %v317 = vld [vmem:[%s236 + $0x98] sm:$0xff]
        %v318 = vld [vmem:[%s236 + $0xa0] sm:$0xff]
        %v319 = vld [vmem:[%s236 + $0xa8] sm:$0xff]
        %v320 = vld [vmem:[%s236 + $0xb0] sm:$0xff]
        %v321 = vld [vmem:[%s236 + $0xb8] sm:$0xff]
        %v322 = vld [vmem:[%s236 + $0xc0] sm:$0xff]
        %v323 = vld [vmem:[%s236 + $0xc8] sm:$0xff]
        %v324 = vld [vmem:[%s236 + $0xd0] sm:$0xff]
        %v325 = vld [vmem:[%s236 + $0xd8] sm:$0xff]
        %v326 = vld [vmem:[%s236 + $0xe0] sm:$0xff]
        %v327 = vld [vmem:[%s236 + $0xe8] sm:$0xff]
        %v328 = vld [vmem:[%s236 + $0xf0] sm:$0xff]
        %v329 = vld [vmem:[%s236 + $0xf8] sm:$0xff]
        %v330 = vld [vmem:[%s236 + $0x100] sm:$0xff]
        %v331 = vld [vmem:[%s236 + $0x108] sm:$0xff]
        %v332 = vld [vmem:[%s236 + $0x110] sm:$0xff]
        %v333 = vld [vmem:[%s236 + $0x118] sm:$0xff]
        %v334 = vld [vmem:[%s236 + $0x120] sm:$0xff]
        %v335 = vld [vmem:[%s236 + $0x128] sm:$0xff]
        %v336 = vld [vmem:[%s236 + $0x130] sm:$0xff]
        %v337 = vld [vmem:[%s236 + $0x138] sm:$0xff]
        %v338 = vld [vmem:[%s236 + $0x140] sm:$0xff]
        %v339 = vld [vmem:[%s236 + $0x148] sm:$0xff]
        %v340 = vld [vmem:[%s236 + $0x150] sm:$0xff]
        %v341 = vld [vmem:[%s236 + $0x158] sm:$0xff]
        %v342 = vld [vmem:[%s236 + $0x160] sm:$0xff]
        %v343 = vld [vmem:[%s236 + $0x168] sm:$0xff]
        %v344 = vld [vmem:[%s236 + $0x170] sm:$0xff]
        %v345 = vld [vmem:[%s236 + $0x178] sm:$0xff]
        %v346 = vld [vmem:[%s236 + $0x180] sm:$0xff]
        %v347 = vld [vmem:[%s236 + $0x188] sm:$0xff]
        %v348 = vld [vmem:[%s245] sm:$0xff]
        %v349 = vld [vmem:[%s245 + $0x8] sm:$0xff]
        %v350 = vld [vmem:[%s245 + $0x10] sm:$0xff]
        %v351 = vld [vmem:[%s245 + $0x18] sm:$0xff]
        %v352 = vld [vmem:[%s245 + $0x20] sm:$0xff]
        %v353 = vld [vmem:[%s245 + $0x28] sm:$0xff]
        %v354 = vld [vmem:[%s245 + $0x30] sm:$0xff]
        %v355 = vld [vmem:[%s245 + $0x38] sm:$0xff]
        %v356 = vld [vmem:[%s245 + $0x40] sm:$0xff]
        %v357 = vld [vmem:[%s245 + $0x48] sm:$0xff]
        %v358 = vld [vmem:[%s245 + $0x50] sm:$0xff]
        %v359 = vld [vmem:[%s245 + $0x58] sm:$0xff]
        %v360 = vld [vmem:[%s245 + $0x60] sm:$0xff]
        %v361 = vld [vmem:[%s245 + $0x68] sm:$0xff]
        %v362 = vld [vmem:[%s245 + $0x70] sm:$0xff]
        %v363 = vld [vmem:[%s245 + $0x78] sm:$0xff]
        %v364 = vld [vmem:[%s245 + $0x80] sm:$0xff]
        %v365 = vld [vmem:[%s245 + $0x88] sm:$0xff]
        %v366 = vld [vmem:[%s245 + $0x90] sm:$0xff]
        %v367 = vld [vmem:[%s245 + $0x98] sm:$0xff]
        %v368 = vld [vmem:[%s245 + $0xa0] sm:$0xff]
        %v369 = vld [vmem:[%s245 + $0xa8] sm:$0xff]
        %v370 = vld [vmem:[%s245 + $0xb0] sm:$0xff]
        %v371 = vld [vmem:[%s245 + $0xb8] sm:$0xff]
        %v372 = vld [vmem:[%s245 + $0xc0] sm:$0xff]
        %v373 = vld [vmem:[%s245 + $0xc8] sm:$0xff]
        %v374 = vld [vmem:[%s245 + $0xd0] sm:$0xff]
        %v375 = vld [vmem:[%s245 + $0xd8] sm:$0xff]
        %v376 = vld [vmem:[%s245 + $0xe0] sm:$0xff]
        %v377 = vld [vmem:[%s245 + $0xe8] sm:$0xff]
        %v378 = vld [vmem:[%s245 + $0xf0] sm:$0xff]
        %v379 = vld [vmem:[%s245 + $0xf8] sm:$0xff]
        %v380 = vld [vmem:[%s245 + $0x100] sm:$0xff]
        %v381 = vld [vmem:[%s245 + $0x108] sm:$0xff]
        %v382 = vld [vmem:[%s245 + $0x110] sm:$0xff]
        %v383 = vld [vmem:[%s245 + $0x118] sm:$0xff]
        %v384 = vld [vmem:[%s245 + $0x120] sm:$0xff]
        %v385 = vld [vmem:[%s245 + $0x128] sm:$0xff]
        %v386 = vld [vmem:[%s245 + $0x130] sm:$0xff]
        %v387 = vld [vmem:[%s245 + $0x138] sm:$0xff]
        %v388 = vld [vmem:[%s245 + $0x140] sm:$0xff]
        %v389 = vld [vmem:[%s245 + $0x148] sm:$0xff]
        %v390 = vld [vmem:[%s245 + $0x150] sm:$0xff]
        %v391 = vld [vmem:[%s245 + $0x158] sm:$0xff]
        %v392 = vld [vmem:[%s245 + $0x160] sm:$0xff]
        %v393 = vld [vmem:[%s245 + $0x168] sm:$0xff]
        %v394 = vld [vmem:[%s245 + $0x170] sm:$0xff]
        %v395 = vld [vmem:[%s245 + $0x178] sm:$0xff]
        %v396 = vld [vmem:[%s245 + $0x180] sm:$0xff]
        %v397 = vld [vmem:[%s245 + $0x188] sm:$0xff]
        %v398 = vld [vmem:[%s254] sm:$0xff]
        %v399 = vld [vmem:[%s254 + $0x8] sm:$0xff]
        %v400 = vld [vmem:[%s254 + $0x10] sm:$0xff]
        %v401 = vld [vmem:[%s254 + $0x18] sm:$0xff]
        %v402 = vld [vmem:[%s254 + $0x20] sm:$0xff]
        %v403 = vld [vmem:[%s254 + $0x28] sm:$0xff]
        %v404 = vld [vmem:[%s254 + $0x30] sm:$0xff]
        %v405 = vld [vmem:[%s254 + $0x38] sm:$0xff]
        %v406 = vld [vmem:[%s254 + $0x40] sm:$0xff]
        %v407 = vld [vmem:[%s254 + $0x48] sm:$0xff]
        %v408 = vld [vmem:[%s254 + $0x50] sm:$0xff]
        %v409 = vld [vmem:[%s254 + $0x58] sm:$0xff]
        %v410 = vld [vmem:[%s254 + $0x60] sm:$0xff]
        %v411 = vld [vmem:[%s254 + $0x68] sm:$0xff]
        %v412 = vld [vmem:[%s254 + $0x70] sm:$0xff]
        %v413 = vld [vmem:[%s254 + $0x78] sm:$0xff]
        %v414 = vld [vmem:[%s254 + $0x80] sm:$0xff]
        %v415 = vld [vmem:[%s254 + $0x88] sm:$0xff]
        %v416 = vld [vmem:[%s254 + $0x90] sm:$0xff]
        %v417 = vld [vmem:[%s254 + $0x98] sm:$0xff]
        %v418 = vld [vmem:[%s254 + $0xa0] sm:$0xff]
        %v419 = vld [vmem:[%s254 + $0xa8] sm:$0xff]
        %v420 = vld [vmem:[%s254 + $0xb0] sm:$0xff]
        %v421 = vld [vmem:[%s254 + $0xb8] sm:$0xff]
        %v422 = vld [vmem:[%s254 + $0xc0] sm:$0xff]
        %v423 = vld [vmem:[%s254 + $0xc8] sm:$0xff]
        %v424 = vld [vmem:[%s254 + $0xd0] sm:$0xff]
        %v425 = vld [vmem:[%s254 + $0xd8] sm:$0xff]
        %v426 = vld [vmem:[%s254 + $0xe0] sm:$0xff]
        %v427 = vld [vmem:[%s254 + $0xe8] sm:$0xff]
        %v428 = vld [vmem:[%s254 + $0xf0] sm:$0xff]
        %v429 = vld [vmem:[%s254 + $0xf8] sm:$0xff]
        %v430 = vld [vmem:[%s254 + $0x100] sm:$0xff]
        %v431 = vld [vmem:[%s254 + $0x108] sm:$0xff]
        %v432 = vld [vmem:[%s254 + $0x110] sm:$0xff]
        %v433 = vld [vmem:[%s254 + $0x118] sm:$0xff]
        %v434 = vld [vmem:[%s254 + $0x120] sm:$0xff]
        %v435 = vld [vmem:[%s254 + $0x128] sm:$0xff]
        %v436 = vld [vmem:[%s254 + $0x130] sm:$0xff]
        %v437 = vld [vmem:[%s254 + $0x138] sm:$0xff]
        %v438 = vld [vmem:[%s254 + $0x140] sm:$0xff]
        %v439 = vld [vmem:[%s254 + $0x148] sm:$0xff]
        %v440 = vld [vmem:[%s254 + $0x150] sm:$0xff]
        %v441 = vld [vmem:[%s254 + $0x158] sm:$0xff]
        %v442 = vld [vmem:[%s254 + $0x160] sm:$0xff]
        %v443 = vld [vmem:[%s254 + $0x168] sm:$0xff]
        %v444 = vld [vmem:[%s254 + $0x170] sm:$0xff]
        %v445 = vld [vmem:[%s254 + $0x178] sm:$0xff]
        %v446 = vld [vmem:[%s254 + $0x180] sm:$0xff]
        %v447 = vld [vmem:[%s254 + $0x188] sm:$0xff]
        %v448 = vsub.f32 %v298, %v348
        %v449 = vsub.f32 %v299, %v349
        %v450 = vsub.f32 %v300, %v350
        %v451 = vsub.f32 %v301, %v351
        %v452 = vsub.f32 %v302, %v352
        %v453 = vsub.f32 %v303, %v353
        %v454 = vsub.f32 %v304, %v354
        %v455 = vsub.f32 %v305, %v355
        %v456 = vsub.f32 %v306, %v356
        %v457 = vsub.f32 %v307, %v357
        %v458 = vsub.f32 %v308, %v358
        %v459 = vsub.f32 %v309, %v359
        %v460 = vsub.f32 %v310, %v360
        %v461 = vsub.f32 %v311, %v361
        %v462 = vsub.f32 %v312, %v362
        %v463 = vsub.f32 %v313, %v363
        %v464 = vsub.f32 %v314, %v364
        %v465 = vsub.f32 %v315, %v365
        %v466 = vsub.f32 %v316, %v366
        %v467 = vsub.f32 %v317, %v367
        %v468 = vsub.f32 %v318, %v368
        %v469 = vsub.f32 %v319, %v369
        %v470 = vsub.f32 %v320, %v370
        %v471 = vsub.f32 %v321, %v371
        %v472 = vsub.f32 %v322, %v372
        %v473 = vsub.f32 %v323, %v373
        %v474 = vsub.f32 %v324, %v374
        %v475 = vsub.f32 %v325, %v375
        %v476 = vsub.f32 %v326, %v376
        %v477 = vsub.f32 %v327, %v377
        %v478 = vsub.f32 %v328, %v378
        %v479 = vsub.f32 %v329, %v379
        %v480 = vsub.f32 %v330, %v380
        %v481 = vsub.f32 %v331, %v381
        %v482 = vsub.f32 %v332, %v382
        %v483 = vsub.f32 %v333, %v383
        %v484 = vsub.f32 %v334, %v384
        %v485 = vsub.f32 %v335, %v385
        %v486 = vsub.f32 %v336, %v386
        %v487 = vsub.f32 %v337, %v387
        %v488 = vsub.f32 %v338, %v388
        %v489 = vsub.f32 %v339, %v389
        %v490 = vsub.f32 %v340, %v390
        %v491 = vsub.f32 %v341, %v391
        %v492 = vsub.f32 %v342, %v392
        %v493 = vsub.f32 %v343, %v393
        %v494 = vsub.f32 %v344, %v394
        %v495 = vsub.f32 %v345, %v395
        %v496 = vsub.f32 %v346, %v396
        %v497 = vsub.f32 %v347, %v397
        %v498 = vmul.f32 %v448, %v448
        %v499 = vmul.f32 %v449, %v449
        %v500 = vmul.f32 %v450, %v450
        %v501 = vmul.f32 %v451, %v451
        %v502 = vmul.f32 %v452, %v452
        %v503 = vmul.f32 %v453, %v453
        %v504 = vmul.f32 %v454, %v454
        %v505 = vmul.f32 %v455, %v455
        %v506 = vmul.f32 %v456, %v456
        %v507 = vmul.f32 %v457, %v457
        %v508 = vmul.f32 %v458, %v458
        %v509 = vmul.f32 %v459, %v459
        %v510 = vmul.f32 %v460, %v460
        %v511 = vmul.f32 %v461, %v461
        %v512 = vmul.f32 %v462, %v462
        %v513 = vmul.f32 %v463, %v463
        %v514 = vmul.f32 %v464, %v464
        %v515 = vmul.f32 %v465, %v465
        %v516 = vmul.f32 %v466, %v466
        %v517 = vmul.f32 %v467, %v467
        %v518 = vmul.f32 %v468, %v468
        %v519 = vmul.f32 %v469, %v469
        %v520 = vmul.f32 %v470, %v470
        %v521 = vmul.f32 %v471, %v471
        %v522 = vmul.f32 %v472, %v472
        %v523 = vmul.f32 %v473, %v473
        %v524 = vmul.f32 %v474, %v474
        %v525 = vmul.f32 %v475, %v475
        %v526 = vmul.f32 %v476, %v476
        %v527 = vmul.f32 %v477, %v477
        %v528 = vmul.f32 %v478, %v478
        %v529 = vmul.f32 %v479, %v479
        %v530 = vmul.f32 %v480, %v480
        %v531 = vmul.f32 %v481, %v481
        %v532 = vmul.f32 %v482, %v482
        %v533 = vmul.f32 %v483, %v483
        %v534 = vmul.f32 %v484, %v484
        %v535 = vmul.f32 %v485, %v485
        %v536 = vmul.f32 %v486, %v486
        %v537 = vmul.f32 %v487, %v487
        %v538 = vmul.f32 %v488, %v488
        %v539 = vmul.f32 %v489, %v489
        %v540 = vmul.f32 %v490, %v490
        %v541 = vmul.f32 %v491, %v491
        %v542 = vmul.f32 %v492, %v492
        %v543 = vmul.f32 %v493, %v493
        %v544 = vmul.f32 %v494, %v494
        %v545 = vmul.f32 %v495, %v495
        %v546 = vmul.f32 %v496, %v496
        %v547 = vmul.f32 %v497, %v497
        %v548 = vsub.f32 0.0, %v398
        %v549 = vsub.f32 0.0, %v399
        %v550 = vsub.f32 0.0, %v400
        %v551 = vsub.f32 0.0, %v401
        %v552 = vsub.f32 0.0, %v402
        %v553 = vsub.f32 0.0, %v403
        %v554 = vsub.f32 0.0, %v404
        %v555 = vsub.f32 0.0, %v405
        %v556 = vsub.f32 0.0, %v406
        %v557 = vsub.f32 0.0, %v407
        %v558 = vsub.f32 0.0, %v408
        %v559 = vsub.f32 0.0, %v409
        %v560 = vsub.f32 0.0, %v410
        %v561 = vsub.f32 0.0, %v411
        %v562 = vsub.f32 0.0, %v412
        %v563 = vsub.f32 0.0, %v413
        %v564 = vsub.f32 0.0, %v414
        %v565 = vsub.f32 0.0, %v415
        %v566 = vsub.f32 0.0, %v416
        %v567 = vsub.f32 0.0, %v417
        %v568 = vsub.f32 0.0, %v418
        %v569 = vsub.f32 0.0, %v419
        %v570 = vsub.f32 0.0, %v420
        %v571 = vsub.f32 0.0, %v421
        %v572 = vsub.f32 0.0, %v422
        %v573 = vsub.f32 0.0, %v423
        %v574 = vsub.f32 0.0, %v424
        %v575 = vsub.f32 0.0, %v425
        %v576 = vsub.f32 0.0, %v426
        %v577 = vsub.f32 0.0, %v427
        %v578 = vsub.f32 0.0, %v428
        %v579 = vsub.f32 0.0, %v429
        %v580 = vsub.f32 0.0, %v430
        %v581 = vsub.f32 0.0, %v431
        %v582 = vsub.f32 0.0, %v432
        %v583 = vsub.f32 0.0, %v433
        %v584 = vsub.f32 0.0, %v434
        %v585 = vsub.f32 0.0, %v435
        %v586 = vsub.f32 0.0, %v436
        %v587 = vsub.f32 0.0, %v437
        %v588 = vsub.f32 0.0, %v438
        %v589 = vsub.f32 0.0, %v439
        %v590 = vsub.f32 0.0, %v440
        %v591 = vsub.f32 0.0, %v441
        %v592 = vsub.f32 0.0, %v442
        %v593 = vsub.f32 0.0, %v443
        %v594 = vsub.f32 0.0, %v444
        %v595 = vsub.f32 0.0, %v445
        %v596 = vsub.f32 0.0, %v446
        %v597 = vsub.f32 0.0, %v447
        %v598 = vmul.f32 %v548, 1.442695
        %v599 = vpow.pop %v598
        %v600 = vmul.f32 %v549, 1.442695
        %v601 = vpow.pop %v600
        %v602 = vmul.f32 %v550, 1.442695
        %v603 = vpow.pop %v602
        %v604 = vmul.f32 %v551, 1.442695
        %v605 = vpow.pop %v604
        %v606 = vmul.f32 %v552, 1.442695
        %v607 = vpow.pop %v606
        %v608 = vmul.f32 %v553, 1.442695
        %v609 = vpow.pop %v608
        %v610 = vmul.f32 %v554, 1.442695
        %v611 = vpow.pop %v610
        %v612 = vmul.f32 %v555, 1.442695
        %v613 = vpow.pop %v612
        %v614 = vmul.f32 %v556, 1.442695
        %v615 = vpow.pop %v614
        %v616 = vmul.f32 %v557, 1.442695
        %v617 = vpow.pop %v616
        %v618 = vmul.f32 %v558, 1.442695
        %v619 = vpow.pop %v618
        %v620 = vmul.f32 %v559, 1.442695
        %v621 = vpow.pop %v620
        %v622 = vmul.f32 %v560, 1.442695
        %v623 = vpow.pop %v622
        %v624 = vmul.f32 %v561, 1.442695
        %v625 = vpow.pop %v624
        %v626 = vmul.f32 %v562, 1.442695
        %v627 = vpow.pop %v626
        %v628 = vmul.f32 %v563, 1.442695
        %v629 = vpow.pop %v628
        %v630 = vmul.f32 %v564, 1.442695
        %v631 = vpow.pop %v630
        %v632 = vmul.f32 %v565, 1.442695
        %v633 = vpow.pop %v632
        %v634 = vmul.f32 %v566, 1.442695
        %v635 = vpow.pop %v634
        %v636 = vmul.f32 %v567, 1.442695
        %v637 = vpow.pop %v636
        %v638 = vmul.f32 %v568, 1.442695
        %v639 = vpow.pop %v638
        %v640 = vmul.f32 %v569, 1.442695
        %v641 = vpow.pop %v640
        %v642 = vmul.f32 %v570, 1.442695
        %v643 = vpow.pop %v642
        %v644 = vmul.f32 %v571, 1.442695
        %v645 = vpow.pop %v644
        %v646 = vmul.f32 %v572, 1.442695
        %v647 = vpow.pop %v646
        %v648 = vmul.f32 %v573, 1.442695
        %v649 = vpow.pop %v648
        %v650 = vmul.f32 %v574, 1.442695
        %v651 = vpow.pop %v650
        %v652 = vmul.f32 %v575, 1.442695
        %v653 = vpow.pop %v652
        %v654 = vmul.f32 %v576, 1.442695
        %v655 = vpow.pop %v654
        %v656 = vmul.f32 %v577, 1.442695
        %v657 = vpow.pop %v656
        %v658 = vmul.f32 %v578, 1.442695
        %v659 = vpow.pop %v658
        %v660 = vmul.f32 %v579, 1.442695
        %v661 = vpow.pop %v660
        %v662 = vmul.f32 %v580, 1.442695
        %v663 = vpow.pop %v662
        %v664 = vmul.f32 %v581, 1.442695
        %v665 = vpow.pop %v664
        %v666 = vmul.f32 %v582, 1.442695
        %v667 = vpow.pop %v666
        %v668 = vmul.f32 %v583, 1.442695
        %v669 = vpow.pop %v668
        %v670 = vmul.f32 %v584, 1.442695
        %v671 = vpow.pop %v670
        %v672 = vmul.f32 %v585, 1.442695
        %v673 = vpow.pop %v672
        %v674 = vmul.f32 %v586, 1.442695
        %v675 = vpow.pop %v674
        %v676 = vmul.f32 %v587, 1.442695
        %v677 = vpow.pop %v676
        %v678 = vmul.f32 %v588, 1.442695
        %v679 = vpow.pop %v678
        %v680 = vmul.f32 %v589, 1.442695
        %v681 = vpow.pop %v680
        %v682 = vmul.f32 %v590, 1.442695
        %v683 = vpow.pop %v682
        %v684 = vmul.f32 %v591, 1.442695
        %v685 = vpow.pop %v684
        %v686 = vmul.f32 %v592, 1.442695
        %v687 = vpow.pop %v686
        %v688 = vmul.f32 %v593, 1.442695
        %v689 = vpow.pop %v688
        %v690 = vmul.f32 %v594, 1.442695
        %v691 = vpow.pop %v690
        %v692 = vmul.f32 %v595, 1.442695
        %v693 = vpow.pop %v692
        %v694 = vmul.f32 %v596, 1.442695
        %v695 = vpow.pop %v694
        %v696 = vmul.f32 %v597, 1.442695
        %v697 = vpow.pop %v696
        %v698 = vmul.f32 %v498, %v599
        %v699 = vmul.f32 %v499, %v601
        %v700 = vmul.f32 %v500, %v603
        %v701 = vmul.f32 %v501, %v605
        %v702 = vmul.f32 %v502, %v607
        %v703 = vmul.f32 %v503, %v609
        %v704 = vmul.f32 %v504, %v611
        %v705 = vmul.f32 %v505, %v613
        %v706 = vmul.f32 %v506, %v615
        %v707 = vmul.f32 %v507, %v617
        %v708 = vmul.f32 %v508, %v619
        %v709 = vmul.f32 %v509, %v621
        %v710 = vmul.f32 %v510, %v623
        %v711 = vmul.f32 %v511, %v625
        %v712 = vmul.f32 %v512, %v627
        %v713 = vmul.f32 %v513, %v629
        %v714 = vmul.f32 %v514, %v631
        %v715 = vmul.f32 %v515, %v633
        %v716 = vmul.f32 %v516, %v635
        %v717 = vmul.f32 %v517, %v637
        %v718 = vmul.f32 %v518, %v639
        %v719 = vmul.f32 %v519, %v641
        %v720 = vmul.f32 %v520, %v643
        %v721 = vmul.f32 %v521, %v645
        %v722 = vmul.f32 %v522, %v647
        %v723 = vmul.f32 %v523, %v649
        %v724 = vmul.f32 %v524, %v651
        %v725 = vmul.f32 %v525, %v653
        %v726 = vmul.f32 %v526, %v655
        %v727 = vmul.f32 %v527, %v657
        %v728 = vmul.f32 %v528, %v659
        %v729 = vmul.f32 %v529, %v661
        %v730 = vmul.f32 %v530, %v663
        %v731 = vmul.f32 %v531, %v665
        %v732 = vmul.f32 %v532, %v667
        %v733 = vmul.f32 %v533, %v669
        %v734 = vmul.f32 %v534, %v671
        %v735 = vmul.f32 %v535, %v673
        %v736 = vmul.f32 %v536, %v675
        %v737 = vmul.f32 %v537, %v677
        %v738 = vmul.f32 %v538, %v679
        %v739 = vmul.f32 %v539, %v681
        %v740 = vmul.f32 %v540, %v683
        %v741 = vmul.f32 %v541, %v685
        %v742 = vmul.f32 %v542, %v687
        %v743 = vmul.f32 %v543, %v689
        %v744 = vmul.f32 %v544, %v691
        %v745 = vmul.f32 %v545, %v693
        %v746 = vmul.f32 %v546, %v695
        %v747 = vmul.f32 %v547, %v697
        %v748 = vadd.f32 %v398, %v698
        %v749 = vadd.f32 %v399, %v699
        %v750 = vadd.f32 %v400, %v700
        %v751 = vadd.f32 %v401, %v701
        %v752 = vadd.f32 %v402, %v702
        %v753 = vadd.f32 %v403, %v703
        %v754 = vadd.f32 %v404, %v704
        %v755 = vadd.f32 %v405, %v705
        %v756 = vadd.f32 %v406, %v706
        %v757 = vadd.f32 %v407, %v707
        %v758 = vadd.f32 %v408, %v708
        %v759 = vadd.f32 %v409, %v709
        %v760 = vadd.f32 %v410, %v710
        %v761 = vadd.f32 %v411, %v711
        %v762 = vadd.f32 %v412, %v712
        %v763 = vadd.f32 %v413, %v713
        %v764 = vadd.f32 %v414, %v714
        %v765 = vadd.f32 %v415, %v715
        %v766 = vadd.f32 %v416, %v716
        %v767 = vadd.f32 %v417, %v717
        %v768 = vadd.f32 %v418, %v718
        %v769 = vadd.f32 %v419, %v719
        %v770 = vadd.f32 %v420, %v720
        %v771 = vadd.f32 %v421, %v721
        %v772 = vadd.f32 %v422, %v722
        %v773 = vadd.f32 %v423, %v723
        %v774 = vadd.f32 %v424, %v724
        %v775 = vadd.f32 %v425, %v725
        %v776 = vadd.f32 %v426, %v726
        %v777 = vadd.f32 %v427, %v727
        %v778 = vadd.f32 %v428, %v728
        %v779 = vadd.f32 %v429, %v729
        %v780 = vadd.f32 %v430, %v730
        %v781 = vadd.f32 %v431, %v731
        %v782 = vadd.f32 %v432, %v732
        %v783 = vadd.f32 %v433, %v733
        %v784 = vadd.f32 %v434, %v734
        %v785 = vadd.f32 %v435, %v735
        %v786 = vadd.f32 %v436, %v736
        %v787 = vadd.f32 %v437, %v737
        %v788 = vadd.f32 %v438, %v738
        %v789 = vadd.f32 %v439, %v739
        %v790 = vadd.f32 %v440, %v740
        %v791 = vadd.f32 %v441, %v741
        %v792 = vadd.f32 %v442, %v742
        %v793 = vadd.f32 %v443, %v743
        %v794 = vadd.f32 %v444, %v744
        %v795 = vadd.f32 %v445, %v745
        %v796 = vadd.f32 %v446, %v746
        %v797 = vadd.f32 %v447, %v747
        %v798 = vld [vmem:[%s286] sm:$0xff]
        %v799 = vadd.f32 %v748, %v749
        %v800 = vadd.f32 %v799, %v750
        %v801 = vadd.f32 %v800, %v751
        %v802 = vadd.f32 %v801, %v752
        %v803 = vadd.f32 %v802, %v753
        %v804 = vadd.f32 %v803, %v754
        %v805 = vadd.f32 %v804, %v755
        %v806 = vadd.f32 %v805, %v756
        %v807 = vadd.f32 %v806, %v757
        %v808 = vadd.f32 %v807, %v758
        %v809 = vadd.f32 %v808, %v759
        %v810 = vadd.f32 %v809, %v760
        %v811 = vadd.f32 %v810, %v761
        %v812 = vadd.f32 %v811, %v762
        %v813 = vadd.f32 %v812, %v763
        %v814 = vadd.f32 %v813, %v764
        %v815 = vadd.f32 %v814, %v765
        %v816 = vadd.f32 %v815, %v766
        %v817 = vadd.f32 %v816, %v767
        %v818 = vadd.f32 %v817, %v768
        %v819 = vadd.f32 %v818, %v769
        %v820 = vadd.f32 %v819, %v770
        %v821 = vadd.f32 %v820, %v771
        %v822 = vadd.f32 %v821, %v772
        %v823 = vadd.f32 %v822, %v773
        %v824 = vadd.f32 %v823, %v774
        %v825 = vadd.f32 %v824, %v775
        %v826 = vadd.f32 %v825, %v776
        %v827 = vadd.f32 %v826, %v777
        %v828 = vadd.f32 %v827, %v778
        %v829 = vadd.f32 %v828, %v779
        %v830 = vadd.f32 %v829, %v780
        %v831 = vadd.f32 %v830, %v781
        %v832 = vadd.f32 %v831, %v782
        %v833 = vadd.f32 %v832, %v783
        %v834 = vadd.f32 %v833, %v784
        %v835 = vadd.f32 %v834, %v785
        %v836 = vadd.f32 %v835, %v786
        %v837 = vadd.f32 %v836, %v787
        %v838 = vadd.f32 %v837, %v788
        %v839 = vadd.f32 %v838, %v789
        %v840 = vadd.f32 %v839, %v790
        %v841 = vadd.f32 %v840, %v791
        %v842 = vadd.f32 %v841, %v792
        %v843 = vadd.f32 %v842, %v793
        %v844 = vadd.f32 %v843, %v794
        %v845 = vadd.f32 %v844, %v795
        %v846 = vadd.f32 %v845, %v796
        %v847 = vadd.f32 %v846, %v797
        %v848 = vadd.f32 %v798, %v847
        %849 = vst [vmem:[%s286] sm:$0xff] %v848
        %s850 = sand.u32 %s127, 1
        %s851 = scalar_lea.sflag [#allocation4], %s850
        %s852 = sand.u32 %s127, 1
        %s853 = smul.addr %s852, 8
        %s854 = scalar_lea.vmem [#allocation8], %s853
        // Predicated region
        $region49: #{tpu_custom_call.1} parent=31 // pred_check
          %p855 = pneg %p137
        $region50: #{tpu_custom_call.1} parent=31 // pred_check_branch
          %857 = sbr.rel (%p855) target = $region52
        $region51: #{tpu_custom_call.1} parent=31 // pred_region
          %s859 = ssub.s32 128, 128
          %860 = vsyncadd %s851, %s859
          %s861 = smul.addr %s27, 128
          %s862 = scalar_lea.hbm %s3, %s861
          %s864 = sshll.u32 %s854, 4
          %s865 = int_to_ptr.vmem [resolvable:$true] %s864
          %867 = dma.vmem_to_hbm [thread:$0]  %s865, 128, %s862, %s851
        $region52: #{tpu_custom_call.1} parent=31 // pred_fallthru
          _
      $region32: #{tpu_custom_call.1} parent=5 // pred_fallthru
        _
      %p868 = scmp.le.s32.totalorder 2, %s18
      // Predicated region
      $region53: #{tpu_custom_call.1} parent=5 // pred_check
        %p869 = pneg %p868
      $region54: #{tpu_custom_call.1} parent=5 // pred_check_branch
        %871 = sbr.rel (%p869) target = $region56
      $region55: #{tpu_custom_call.1} parent=5 // pred_region
        %s872 = ssub.s32 %s18, 2
        // Predicated region
        $region57: #{tpu_custom_call.1} parent=55 // pred_check
          %p873 = pneg %p143
        $region58: #{tpu_custom_call.1} parent=55 // pred_check_branch
          %875 = sbr.rel (%p873) target = $region60
        $region59: #{tpu_custom_call.1} parent=55 // pred_region
          %s876 = sand.u32 %s128, 1
          %s877 = scalar_lea.sflag [#allocation4], %s876
          %s878 = sand.u32 %s128, 1
          %s879 = smul.addr %s878, 8
          %s880 = scalar_lea.vmem [#allocation8], %s879
          %881 = dma.done %s877, 128
        $region60: #{tpu_custom_call.1} parent=55 // pred_fallthru
          _
      $region56: #{tpu_custom_call.1} parent=5 // pred_fallthru
        _
    $region6: #{tpu_custom_call.1} parent=1 // loop_footer
      %s22 = sadd.s32 1, %s18
    $region7: #{tpu_custom_call.1} parent=1 // loop_footer_branch
      %17 = sbr.rel target = $region3
    $region8: #{tpu_custom_call.1} parent=1 // loop_exit
      _
    %882 = vsyncpa [#allocation3], 1
    %s883 = scalar_lea.sflag [#allocation3], 1
    %884 = vsyncpa %s883, 1
    %885 = vsyncpa [#allocation6], 1
    %s886 = scalar_lea.sflag [#allocation6], 1
    %887 = vsyncpa %s886, 1
    %888 = vsyncpa [#allocation4], 1
    %s889 = scalar_lea.sflag [#allocation4], 1
    %890 = vsyncpa %s889, 1

</llo_original>
